<compile_context>
chip_gen: v6e
topology: v6e:2x2x1
jax: 0.10.0
libtpu: 0.0.40
codegen_flags: <defaults>
</compile_context>

<pallas_src>
import jax
import jax.numpy as jnp
from jax import lax
from jax.experimental import pallas as pl
from jax.experimental.pallas import tpu as pltpu

_MAX_ROW_BLOCK = 256          # MXU-friendly row tile for node/edge batches
_EDGE_BLOCK = 512             # edge tile for the scatter-add reduction
_VMEM_LIMIT = 32 * 1024 * 1024


def _round_up(x, m):
    return (x + m - 1) // m * m


# ----------------------------- Pallas kernels -----------------------------

def _make_mlp_kernel(n_parts, layer_norm, residual_idx, two_outputs):
    """3-layer MLP (+optional LayerNorm) with split-W1 inputs and fused residual.

    inputs : parts[0..n-1], w1_split[0..n-1] (bf16), b1, w2 (bf16), b2, w3 (bf16), b3,
             [gamma, beta]
    outputs: y                        (residual_idx is None)
             y + parts[residual_idx]  (residual fused, single output)
             (y, y + parts[residual_idx])  (two_outputs=True; pre-residual feeds scatter)
    """

    def kernel(*refs):
        parts = refs[:n_parts]
        w1s = refs[n_parts:2 * n_parts]
        i = 2 * n_parts
        b1, w2, b2, w3, b3 = refs[i:i + 5]
        i += 5
        if layer_norm:
            gamma, beta = refs[i:i + 2]
            i += 2
        outs = refs[i:]

        # layer 1: sum of per-part bf16 matmuls, f32 accumulation
        h = jnp.dot(parts[0][...].astype(jnp.bfloat16), w1s[0][...],
                    preferred_element_type=jnp.float32)
        for k in range(1, n_parts):
            h = h + jnp.dot(parts[k][...].astype(jnp.bfloat16), w1s[k][...],
                            preferred_element_type=jnp.float32)
        h = jnp.maximum(h + b1[...], 0.0)
        # layer 2
        h = jnp.maximum(
            jnp.dot(h.astype(jnp.bfloat16), w2[...],
                    preferred_element_type=jnp.float32) + b2[...], 0.0)
        # layer 3
        y = jnp.dot(h.astype(jnp.bfloat16), w3[...],
                    preferred_element_type=jnp.float32) + b3[...]
        if layer_norm:
            mean = jnp.mean(y, axis=-1, keepdims=True)
            var = jnp.mean(jnp.square(y - mean), axis=-1, keepdims=True)
            y = (y - mean) * lax.rsqrt(var + 1e-5) * gamma[...] + beta[...]

        if residual_idx is None:
            outs[0][...] = y
        elif two_outputs:
            outs[0][...] = y                               # pre-residual (for scatter)
            outs[1][...] = y + parts[residual_idx][...]    # residual fused
        else:
            outs[0][...] = y + parts[residual_idx][...]

    return kernel


def _scatter_add_kernel(recv_ref, edge_ref, o_ref):
    """segment_sum over receivers, expressed as a bf16 one-hot matmul on the MXU.

    Output block is resident across the (arbitrary) edge-tile grid axis and accumulated
    in f32. onehot[i, j] = (node i == receivers[j]); padded edges carry an out-of-range
    receiver so they never match.
    """

    @pl.when(pl.program_id(0) == 0)
    def _():
        o_ref[...] = jnp.zeros_like(o_ref)

    n = o_ref.shape[0]
    et = edge_ref.shape[0]
    node_ids = lax.broadcasted_iota(jnp.int32, (n, et), 0)       # FIX: node axis (dim 0)
    onehot = (node_ids == recv_ref[...]).astype(jnp.bfloat16)    # exact 0/1 in bf16
    o_ref[...] += jnp.dot(onehot, edge_ref[...].astype(jnp.bfloat16),
                          preferred_element_type=jnp.float32)


# ----------------------------- wrappers -----------------------------

def fused_mlp_pallas(parts, p, *, layer_norm=True, residual_idx=None,
                     return_preresidual=False, max_row_block=_MAX_ROW_BLOCK):
    """Run MLP(concat(parts)) (+LN, +fused residual) without materializing the concat."""
    rows = parts[0].shape[0]
    for q in parts:
        assert q.shape[0] == rows
    dout = p["w3"].shape[1]

    rows8 = _round_up(rows, 8)
    block_rows = min(max_row_block, rows8)
    rows_pad = _round_up(rows8, block_rows)

    # split W1 along its input dim to match the parts (avoids the [rows, sum(d_i)] concat)
    w1 = p["w1"].astype(jnp.bfloat16)
    w1_splits, off = [], 0
    for q in parts:
        d = q.shape[1]
        w1_splits.append(w1[off:off + d, :])
        off += d
    assert off == w1.shape[0]

    w2 = p["w2"].astype(jnp.bfloat16)
    w3 = p["w3"].astype(jnp.bfloat16)
    b1, b2, b3 = p["b1"], p["b2"], p["b3"]

    # lane-dense output for narrow decoders (e.g. out=3 -> 128); only safe without LN
    if not layer_norm and dout % 128 != 0:
        dout_pad = _round_up(dout, 128)
        w3 = jnp.pad(w3, ((0, 0), (0, dout_pad - dout)))
        b3 = jnp.pad(b3, ((0, 0), (0, dout_pad - dout)))
    else:
        dout_pad = dout

    def pad_rows(a):
        return jnp.pad(a.astype(jnp.float32), ((0, rows_pad - rows), (0, 0)))

    args = [pad_rows(q) for q in parts]
    args += w1_splits + [b1, w2, b2, w3, b3]
    if layer_norm:
        args += [p["gamma"], p["beta"]]

    def row_spec(width):
        return pl.BlockSpec((block_rows, width), lambda i: (i, 0))

    def full_spec(a):
        return pl.BlockSpec(a.shape, lambda i: (0, 0))

    in_specs = [row_spec(q.shape[1]) for q in parts]
    in_specs += [full_spec(a) for a in (w1_splits + [b1, w2, b2, w3, b3])]
    if layer_norm:
        in_specs += [full_spec(p["gamma"]), full_spec(p["beta"])]

    two_outputs = (residual_idx is not None) and return_preresidual
    out_sds = jax.ShapeDtypeStruct((rows_pad, dout_pad), jnp.float32)
    out_spec = pl.BlockSpec((block_rows, dout_pad), lambda i: (i, 0))
    if two_outputs:
        out_shape = (out_sds, out_sds)
        out_specs = (out_spec, out_spec)
    else:
        out_shape = out_sds
        out_specs = out_spec

    kernel = _make_mlp_kernel(len(parts), layer_norm, residual_idx, two_outputs)

    result = pl.pallas_call(
        kernel,
        out_shape=out_shape,
        grid=(rows_pad // block_rows,),
        in_specs=in_specs,
        out_specs=out_specs,
        compiler_params=pltpu.CompilerParams(
            dimension_semantics=("parallel",),
            vmem_limit_bytes=_VMEM_LIMIT),
    )(*args)

    if two_outputs:
        y_pre, y_res = result
        return y_pre[:rows, :dout], y_res[:rows, :dout]
    return result[:rows, :dout]


def scatter_add_pallas(edge_feats, receivers, num_nodes, *, edge_block=_EDGE_BLOCK):
    """sum edge_feats over receivers -> [num_nodes, H], tiled over edge blocks."""
    # TODO(synk): for very large graphs replace the one-hot matmul with a sorted-receiver
    # segment sum using PrefetchScalarGridSpec offsets (removes the O(N*E) one-hot term).
    E, H = edge_feats.shape
    n_pad = _round_up(num_nodes, 8)
    et = min(edge_block, _round_up(E, 128))
    e_pad = _round_up(E, et)

    ef = jnp.pad(edge_feats.astype(jnp.float32), ((0, e_pad - E), (0, 0)))
    # padded edges point at an out-of-range node so they never contribute
    recv = jnp.pad(receivers.astype(jnp.int32), (0, e_pad - E),
                   constant_values=n_pad).reshape(1, e_pad)

    agg = pl.pallas_call(
        _scatter_add_kernel,
        out_shape=jax.ShapeDtypeStruct((n_pad, H), jnp.float32),
        grid=(e_pad // et,),
        in_specs=[pl.BlockSpec((1, et), lambda s: (0, s)),
                  pl.BlockSpec((et, H), lambda s: (s, 0))],
        out_specs=pl.BlockSpec((n_pad, H), lambda s: (0, 0)),
        compiler_params=pltpu.CompilerParams(
            dimension_semantics=("arbitrary",),
            vmem_limit_bytes=_VMEM_LIMIT),
    )(recv, ef)
    return agg[:num_nodes]


# ----------------------------- model driver (glue + kernels) -----------------------------

def encode_process_decode(x, edge_index, edge_attr, params, mlp_fn, scatter_fn):
    senders = edge_index[0]
    receivers = edge_index[1]
    n_nodes = x.shape[0]

    # Encode
    x = mlp_fn([x], params["node_enc"], layer_norm=True)
    e = mlp_fn([edge_attr], params["edge_enc"], layer_norm=True)

    # Process (GraphNetBlocks; aggregation uses pre-residual e_upd, residuals fused in-kernel)
    for blk in params["blocks"]:
        # TODO(synk): fuse the x[senders]/x[receivers] gathers into the edge-MLP kernel via
        # scalar-prefetched indices (pl.Element / PrefetchScalarGridSpec) to cut HBM traffic.
        e_upd, e = mlp_fn([x[senders], x[receivers], e], blk["edge_mlp"],
                          layer_norm=True, residual_idx=2, return_preresidual=True)
        agg = scatter_fn(e_upd, receivers, n_nodes)
        x = mlp_fn([x, agg], blk["node_mlp"], layer_norm=True, residual_idx=0)

    # Decode (no LayerNorm)
    return mlp_fn([x], params["decoder"], layer_norm=False)


# ----------------------------- references (plain JAX) -----------------------------

def fused_mlp_ref(parts, p, *, layer_norm=True, residual_idx=None,
                  return_preresidual=False):
    """bf16-matched reference: identical math to the Pallas kernel."""
    w1 = p["w1"].astype(jnp.bfloat16)
    h, off = None, 0
    for q in parts:
        d = q.shape[1]
        c = jnp.dot(q.astype(jnp.bfloat16), w1[off:off + d],
                    preferred_element_type=jnp.float32)
        h = c if h is None else h + c
        off += d
    h = jnp.maximum(h + p["b1"], 0.0)
    h = jnp.maximum(
        jnp.dot(h.astype(jnp.bfloat16), p["w2"].astype(jnp.bfloat16),
                preferred_element_type=jnp.float32) + p["b2"], 0.0)
    y = jnp.dot(h.astype(jnp.bfloat16), p["w3"].astype(jnp.bfloat16),
                preferred_element_type=jnp.float32) + p["b3"]
    if layer_norm:
        mean = jnp.mean(y, axis=-1, keepdims=True)
        var = jnp.mean(jnp.square(y - mean), axis=-1, keepdims=True)
        y = (y - mean) * lax.rsqrt(var + 1e-5) * p["gamma"] + p["beta"]
    if residual_idx is None:
        return y
    y_res = y + parts[residual_idx]
    return (y, y_res) if return_preresidual else y_res


def scatter_add_ref(edge_feats, receivers, num_nodes):
    ef = edge_feats.astype(jnp.bfloat16).astype(jnp.float32)
    return jax.ops.segment_sum(ef, receivers, num_segments=num_nodes)


def fused_mlp_f32_ref(parts, p, *, layer_norm=True, residual_idx=None,
                      return_preresidual=False):
    """Pure f32 reference matching the PyTorch module (concat + full W1)."""
    hi = lax.Precision.HIGHEST
    xin = jnp.concatenate(parts, axis=-1)
    h = jnp.maximum(jnp.dot(xin, p["w1"], precision=hi) + p["b1"], 0.0)
    h = jnp.maximum(jnp.dot(h, p["w2"], precision=hi) + p["b2"], 0.0)
    y = jnp.dot(h, p["w3"], precision=hi) + p["b3"]
    if layer_norm:
        mean = jnp.mean(y, axis=-1, keepdims=True)
        var = jnp.mean(jnp.square(y - mean), axis=-1, keepdims=True)
        y = (y - mean) * lax.rsqrt(var + 1e-5) * p["gamma"] + p["beta"]
    if residual_idx is None:
        return y
    y_res = y + parts[residual_idx]
    return (y, y_res) if return_preresidual else y_res


def scatter_add_f32_ref(edge_feats, receivers, num_nodes):
    return jax.ops.segment_sum(edge_feats, receivers, num_segments=num_nodes)


# ----------------------------- deterministic init -----------------------------

def init_mlp_params(key, in_size, hidden, out_size, layer_norm=True):
    ks = jax.random.split(key, 6)

    def lin(kw, kb, fin, fout):
        bound = 1.0 / jnp.sqrt(jnp.float32(fin))
        w = jax.random.uniform(kw, (fin, fout), jnp.float32, -bound, bound)
        b = jax.random.uniform(kb, (1, fout), jnp.float32, -bound, bound)
        return w, b

    w1, b1 = lin(ks[0], ks[1], in_size, hidden)
    w2, b2 = lin(ks[2], ks[3], hidden, hidden)
    w3, b3 = lin(ks[4], ks[5], hidden, out_size)
    p = dict(w1=w1, b1=b1, w2=w2, b2=b2, w3=w3, b3=b3)
    if layer_norm:
        p["gamma"] = jnp.ones((1, out_size), jnp.float32)
        p["beta"] = jnp.zeros((1, out_size), jnp.float32)
    return p


def init_params(key, message_passing_num, node_input_size, edge_input_size,
                output_size, hidden_size):
    keys = jax.random.split(key, 3 + 2 * message_passing_num)
    params = {
        "node_enc": init_mlp_params(keys[0], node_input_size, hidden_size, hidden_size, True),
        "edge_enc": init_mlp_params(keys[1], edge_input_size, hidden_size, hidden_size, True),
        "decoder": init_mlp_params(keys[2], hidden_size, hidden_size, output_size, False),
        "blocks": [],
    }
    for m in range(message_passing_num):
        params["blocks"].append(dict(
            edge_mlp=init_mlp_params(keys[3 + 2 * m], 3 * hidden_size, hidden_size, hidden_size, True),
            node_mlp=init_mlp_params(keys[4 + 2 * m], 2 * hidden_size, hidden_size, hidden_size, True),
        ))
    return params


# ----------------------------- main -----------------------------

if __name__ == "__main__":
    MESSAGE_PASSING_NUM = 2
    NODE_INPUT_SIZE = 6
    EDGE_INPUT_SIZE = 4
    OUTPUT_SIZE = 3
    HIDDEN_SIZE = 128     # lane-aligned hidden size (matches the PyTorch default)
    N_NODES = 64
    N_EDGES = 256

    root = jax.random.PRNGKey(0)
    k_x, k_e, k_idx, k_params = jax.random.split(root, 4)

    x = jax.random.normal(k_x, (N_NODES, NODE_INPUT_SIZE), jnp.float32)
    edge_attr = jax.random.normal(k_e, (N_EDGES, EDGE_INPUT_SIZE), jnp.float32)
    edge_index = jax.random.randint(k_idx, (2, N_EDGES), 0, N_NODES, jnp.int32)

    params = init_params(k_params, MESSAGE_PASSING_NUM, NODE_INPUT_SIZE,
                         EDGE_INPUT_SIZE, OUTPUT_SIZE, HIDDEN_SIZE)

    out = encode_process_decode(x, edge_index, edge_attr, params,
                                fused_mlp_pallas, scatter_add_pallas)
    out = jax.block_until_ready(out)

    # Primary check: bf16-matched plain-JAX reference (identical math to the kernels).
    ref_bf16 = jax.block_until_ready(
        encode_process_decode(x, edge_index, edge_attr, params,
                              fused_mlp_ref, scatter_add_ref))
    # Sanity check: pure f32 reference of the original PyTorch forward (bf16 drift allowed).
    ref_f32 = jax.block_until_ready(
        encode_process_decode(x, edge_index, edge_attr, params,
                              fused_mlp_f32_ref, scatter_add_f32_ref))

    assert out.shape == (N_NODES, OUTPUT_SIZE)
    assert bool(jnp.all(jnp.isfinite(out)))

    err_matched = float(jnp.max(jnp.abs(out - ref_bf16)))
    assert jnp.allclose(out, ref_bf16, atol=5e-3, rtol=5e-3), (
        f"mismatch vs bf16-matched reference: max abs diff {err_matched}")

    err_f32 = float(jnp.max(jnp.abs(out - ref_f32)))
    assert jnp.allclose(out, ref_f32, atol=1e-1, rtol=1e-1), (
        f"mismatch vs f32 reference: max abs diff {err_f32}")

    print("KERNEL_OK")
</pallas_src>

<mosaic_0001>
module attributes {stable_mosaic.version = 11 : i64} {
  func.func @kernel(%arg0: i32, %arg1: memref<64x6xf32, #tpu.memory_space<vmem>>, %arg2: memref<6x128xbf16, #tpu.memory_space<vmem>>, %arg3: memref<1x128xf32, #tpu.memory_space<vmem>>, %arg4: memref<128x128xbf16, #tpu.memory_space<vmem>>, %arg5: memref<1x128xf32, #tpu.memory_space<vmem>>, %arg6: memref<128x128xbf16, #tpu.memory_space<vmem>>, %arg7: memref<1x128xf32, #tpu.memory_space<vmem>>, %arg8: memref<1x128xf32, #tpu.memory_space<vmem>>, %arg9: memref<1x128xf32, #tpu.memory_space<vmem>>, %arg10: memref<64x128xf32, #tpu.memory_space<vmem>>) attributes {dimension_semantics = [#tpu.dimension_semantics<parallel>], iteration_bounds = array<i64: 1>, scalar_prefetch = 0 : i64, scratch_operands = 0 : i64, tpu.core_type = #tpu.core_type<tc>, window_params = [{transform_indices = @transform_0, window_bounds = array<i64: 64, 6>}, {pipeline_mode = #tpu.pipeline_mode<synchronous>, transform_indices = @transform_1, window_bounds = array<i64: 6, 128>}, {pipeline_mode = #tpu.pipeline_mode<synchronous>, transform_indices = @transform_2, window_bounds = array<i64: 1, 128>}, {pipeline_mode = #tpu.pipeline_mode<synchronous>, transform_indices = @transform_3, window_bounds = array<i64: 128, 128>}, {pipeline_mode = #tpu.pipeline_mode<synchronous>, transform_indices = @transform_4, window_bounds = array<i64: 1, 128>}, {pipeline_mode = #tpu.pipeline_mode<synchronous>, transform_indices = @transform_5, window_bounds = array<i64: 128, 128>}, {pipeline_mode = #tpu.pipeline_mode<synchronous>, transform_indices = @transform_6, window_bounds = array<i64: 1, 128>}, {pipeline_mode = #tpu.pipeline_mode<synchronous>, transform_indices = @transform_7, window_bounds = array<i64: 1, 128>}, {pipeline_mode = #tpu.pipeline_mode<synchronous>, transform_indices = @transform_8, window_bounds = array<i64: 1, 128>}, {transform_indices = @transform_9, window_bounds = array<i64: 64, 128>}]} {
    %c0 = arith.constant 0 : index
    %c0_0 = arith.constant 0 : index
    %0 = vector.load %arg1[%c0, %c0_0] : memref<64x6xf32, #tpu.memory_space<vmem>>, vector<64x6xf32>
    %1 = arith.truncf %0 : vector<64x6xf32> to vector<64x6xbf16>
    %c0_1 = arith.constant 0 : index
    %c0_2 = arith.constant 0 : index
    %2 = vector.load %arg2[%c0_1, %c0_2] : memref<6x128xbf16, #tpu.memory_space<vmem>>, vector<6x128xbf16>
    %cst = arith.constant dense<0.000000e+00> : vector<64x128xf32>
    %3 = tpu.matmul %1, %2, %cst {dimension_numbers = #tpu.dot_dimension_numbers<[1], [0], [0], [1], [0, 0, 1, 1], [], []>} : vector<64x6xbf16>, vector<6x128xbf16>, vector<64x128xf32> -> vector<64x128xf32>
    %c0_3 = arith.constant 0 : index
    %c0_4 = arith.constant 0 : index
    %4 = vector.load %arg3[%c0_3, %c0_4] : memref<1x128xf32, #tpu.memory_space<vmem>>, vector<1x128xf32>
    %5 = vector.broadcast %4 : vector<1x128xf32> to vector<64x128xf32>
    %6 = arith.addf %3, %5 : vector<64x128xf32>
    %cst_5 = arith.constant 0.000000e+00 : f32
    %7 = vector.broadcast %cst_5 : f32 to vector<64x128xf32>
    %8 = arith.maximumf %6, %7 : vector<64x128xf32>
    %9 = arith.truncf %8 : vector<64x128xf32> to vector<64x128xbf16>
    %c0_6 = arith.constant 0 : index
    %c0_7 = arith.constant 0 : index
    %10 = vector.load %arg4[%c0_6, %c0_7] : memref<128x128xbf16, #tpu.memory_space<vmem>>, vector<128x128xbf16>
    %cst_8 = arith.constant dense<0.000000e+00> : vector<64x128xf32>
    %11 = tpu.matmul %9, %10, %cst_8 {dimension_numbers = #tpu.dot_dimension_numbers<[1], [0], [0], [1], [0, 0, 1, 1], [], []>} : vector<64x128xbf16>, vector<128x128xbf16>, vector<64x128xf32> -> vector<64x128xf32>
    %c0_9 = arith.constant 0 : index
    %c0_10 = arith.constant 0 : index
    %12 = vector.load %arg5[%c0_9, %c0_10] : memref<1x128xf32, #tpu.memory_space<vmem>>, vector<1x128xf32>
    %13 = vector.broadcast %12 : vector<1x128xf32> to vector<64x128xf32>
    %14 = arith.addf %11, %13 : vector<64x128xf32>
    %cst_11 = arith.constant 0.000000e+00 : f32
    %15 = vector.broadcast %cst_11 : f32 to vector<64x128xf32>
    %16 = arith.maximumf %14, %15 : vector<64x128xf32>
    %17 = arith.truncf %16 : vector<64x128xf32> to vector<64x128xbf16>
    %c0_12 = arith.constant 0 : index
    %c0_13 = arith.constant 0 : index
    %18 = vector.load %arg6[%c0_12, %c0_13] : memref<128x128xbf16, #tpu.memory_space<vmem>>, vector<128x128xbf16>
    %cst_14 = arith.constant dense<0.000000e+00> : vector<64x128xf32>
    %19 = tpu.matmul %17, %18, %cst_14 {dimension_numbers = #tpu.dot_dimension_numbers<[1], [0], [0], [1], [0, 0, 1, 1], [], []>} : vector<64x128xbf16>, vector<128x128xbf16>, vector<64x128xf32> -> vector<64x128xf32>
    %c0_15 = arith.constant 0 : index
    %c0_16 = arith.constant 0 : index
    %20 = vector.load %arg7[%c0_15, %c0_16] : memref<1x128xf32, #tpu.memory_space<vmem>>, vector<1x128xf32>
    %21 = vector.broadcast %20 : vector<1x128xf32> to vector<64x128xf32>
    %22 = arith.addf %19, %21 : vector<64x128xf32>
    %cst_17 = arith.constant dense<0.000000e+00> : vector<64xf32>
    %23 = vector.multi_reduction <add>, %22, %cst_17 [1] : vector<64x128xf32> to vector<64xf32>
    %24 = vector.shape_cast %23 : vector<64xf32> to vector<64x1xf32>
    %cst_18 = arith.constant 1.280000e+02 : f32
    %25 = vector.broadcast %cst_18 : f32 to vector<64x1xf32>
    %26 = arith.divf %24, %25 : vector<64x1xf32>
    %27 = vector.broadcast %26 : vector<64x1xf32> to vector<64x128xf32>
    %28 = arith.subf %22, %27 : vector<64x128xf32>
    %29 = arith.mulf %28, %28 : vector<64x128xf32>
    %cst_19 = arith.constant dense<0.000000e+00> : vector<64xf32>
    %30 = vector.multi_reduction <add>, %29, %cst_19 [1] : vector<64x128xf32> to vector<64xf32>
    %31 = vector.shape_cast %30 : vector<64xf32> to vector<64x1xf32>
    %cst_20 = arith.constant 1.280000e+02 : f32
    %32 = vector.broadcast %cst_20 : f32 to vector<64x1xf32>
    %33 = arith.divf %31, %32 : vector<64x1xf32>
    %34 = vector.broadcast %26 : vector<64x1xf32> to vector<64x128xf32>
    %35 = arith.subf %22, %34 : vector<64x128xf32>
    %cst_21 = arith.constant 9.99999974E-6 : f32
    %36 = vector.broadcast %cst_21 : f32 to vector<64x1xf32>
    %37 = arith.addf %33, %36 : vector<64x1xf32>
    %38 = math.rsqrt %37 : vector<64x1xf32>
    %39 = vector.broadcast %38 : vector<64x1xf32> to vector<64x128xf32>
    %40 = arith.mulf %35, %39 : vector<64x128xf32>
    %c0_22 = arith.constant 0 : index
    %c0_23 = arith.constant 0 : index
    %41 = vector.load %arg8[%c0_22, %c0_23] : memref<1x128xf32, #tpu.memory_space<vmem>>, vector<1x128xf32>
    %42 = vector.broadcast %41 : vector<1x128xf32> to vector<64x128xf32>
    %43 = arith.mulf %40, %42 : vector<64x128xf32>
    %c0_24 = arith.constant 0 : index
    %c0_25 = arith.constant 0 : index
    %44 = vector.load %arg9[%c0_24, %c0_25] : memref<1x128xf32, #tpu.memory_space<vmem>>, vector<1x128xf32>
    %45 = vector.broadcast %44 : vector<1x128xf32> to vector<64x128xf32>
    %46 = arith.addf %43, %45 : vector<64x128xf32>
    %c0_26 = arith.constant 0 : index
    %c0_27 = arith.constant 0 : index
    %47 = vector.load %arg10[%c0_26, %c0_27] : memref<64x128xf32, #tpu.memory_space<vmem>>, vector<64x128xf32>
    tpu.vector_store %arg10[%c0_26, %c0_27], %46 {strides = array<i32>} : memref<64x128xf32, #tpu.memory_space<vmem>>, vector<64x128xf32>,
    return
  }
  func.func @transform_0(%arg0: i32) -> (i32, i32) {
    %c0_i32 = arith.constant 0 : i32
    %c0_i32_0 = arith.constant 0 : i32
    return %arg0, %c0_i32 : i32, i32
  }
  func.func @transform_1(%arg0: i32) -> (i32, i32) {
    %c0_i32 = arith.constant 0 : i32
    %c0_i32_0 = arith.constant 0 : i32
    %c0_i32_1 = arith.constant 0 : i32
    return %c0_i32, %c0_i32_0 : i32, i32
  }
  func.func @transform_2(%arg0: i32) -> (i32, i32) {
    %c0_i32 = arith.constant 0 : i32
    %c0_i32_0 = arith.constant 0 : i32
    %c0_i32_1 = arith.constant 0 : i32
    return %c0_i32, %c0_i32_0 : i32, i32
  }
  func.func @transform_3(%arg0: i32) -> (i32, i32) {
    %c0_i32 = arith.constant 0 : i32
    %c0_i32_0 = arith.constant 0 : i32
    %c0_i32_1 = arith.constant 0 : i32
    return %c0_i32, %c0_i32_0 : i32, i32
  }
  func.func @transform_4(%arg0: i32) -> (i32, i32) {
    %c0_i32 = arith.constant 0 : i32
    %c0_i32_0 = arith.constant 0 : i32
    %c0_i32_1 = arith.constant 0 : i32
    return %c0_i32, %c0_i32_0 : i32, i32
  }
  func.func @transform_5(%arg0: i32) -> (i32, i32) {
    %c0_i32 = arith.constant 0 : i32
    %c0_i32_0 = arith.constant 0 : i32
    %c0_i32_1 = arith.constant 0 : i32
    return %c0_i32, %c0_i32_0 : i32, i32
  }
  func.func @transform_6(%arg0: i32) -> (i32, i32) {
    %c0_i32 = arith.constant 0 : i32
    %c0_i32_0 = arith.constant 0 : i32
    %c0_i32_1 = arith.constant 0 : i32
    return %c0_i32, %c0_i32_0 : i32, i32
  }
  func.func @transform_7(%arg0: i32) -> (i32, i32) {
    %c0_i32 = arith.constant 0 : i32
    %c0_i32_0 = arith.constant 0 : i32
    %c0_i32_1 = arith.constant 0 : i32
    return %c0_i32, %c0_i32_0 : i32, i32
  }
  func.func @transform_8(%arg0: i32) -> (i32, i32) {
    %c0_i32 = arith.constant 0 : i32
    %c0_i32_0 = arith.constant 0 : i32
    %c0_i32_1 = arith.constant 0 : i32
    return %c0_i32, %c0_i32_0 : i32, i32
  }
  func.func @transform_9(%arg0: i32) -> (i32, i32) {
    %c0_i32 = arith.constant 0 : i32
    %c0_i32_0 = arith.constant 0 : i32
    return %arg0, %c0_i32 : i32, i32
  }
}

</mosaic_0001>

<llo_original>
// kernel: tpu_custom_call.1
$region0: #{tpu_custom_call.1}
  #allocation0 [shape = 'u32[]', space=smem, size = 0x4, offset = 0x4, fixed_abs, tag = 'smem constant byte address 0x4 - core index']
  #allocation1 [shape = 'u32[144,128]{1,0:T(1,128)}', space=vmem, size = 0x12000, scoped, tag = 'internal scratch']
  %s0 = inlined_call_operand.vmem [shape: f32[64,6], index: 0, kind: input, shape index: {}]
  %s1 = inlined_call_operand.vmem [shape: bf16[6,128], index: 1, kind: input, shape index: {}]
  %s2 = inlined_call_operand.vmem [shape: f32[1,128], index: 2, kind: input, shape index: {}]
  %s3 = inlined_call_operand.vmem [shape: bf16[128,128], index: 3, kind: input, shape index: {}]
  %s4 = inlined_call_operand.vmem [shape: f32[1,128], index: 4, kind: input, shape index: {}]
  %s5 = inlined_call_operand.hbm [shape: bf16[128,128], index: 5, kind: input, shape index: {}]
  %s6 = inlined_call_operand.vmem [shape: f32[1,128], index: 6, kind: input, shape index: {}]
  %s7 = inlined_call_operand.vmem [shape: f32[1,128], index: 7, kind: input, shape index: {}]
  %s8 = inlined_call_operand.vmem [shape: f32[1,128], index: 8, kind: input, shape index: {}]
  %s9 = inlined_call_operand.hbm [shape: f32[64,128], index: 9, kind: output, shape index: {}]
  %s10 = sld [smem:[#allocation0]]
  $region50: #{tpu_custom_call.1} parent=0
    _
  %s12 = ssub.s32 1, %s10
  %s13 = scalar_select 0, %s12, %s10
  $region1: #{tpu_custom_call.1} parent=0
    #allocation2 [shape = 'u8[32768]{0}', space=vmem, size = 0x8000, scoped, tag = 'input window, operand 5, single buffered']
    #allocation3 [shape = 's32[1]{0}', space=sflag, size = 0x4, scoped, tag = 'scoped memory for tpu_custom_call.1']
    #allocation4 [shape = 's32[1]{0}', space=sflag, size = 0x4, scoped, tag = 'scoped memory for tpu_custom_call.1']
    #allocation5 [shape = 'u8[32768]{0}', space=vmem, size = 0x8000, scoped, tag = 'output window, operand 0, single buffered']
    %14 = vsyncpa [#allocation3], 0
    %15 = vsyncpa [#allocation4], 0
    // Predicated region
    $region2: #{tpu_custom_call.1} parent=1 // pred_check
      _
    $region3: #{tpu_custom_call.1} parent=1 // pred_check_branch
      %17 = sbr.rel (0) target = $region5
    $region4: #{tpu_custom_call.1} parent=1 // pred_region
      _
    $region5: #{tpu_custom_call.1} parent=1 // pred_fallthru
      _
    // Predicated region
    $region6: #{tpu_custom_call.1} parent=1 // pred_check
      _
    $region7: #{tpu_custom_call.1} parent=1 // pred_check_branch
      %19 = sbr.rel (0) target = $region9
    $region8: #{tpu_custom_call.1} parent=1 // pred_region
      _
    $region9: #{tpu_custom_call.1} parent=1 // pred_fallthru
      _
    // Predicated region
    $region10: #{tpu_custom_call.1} parent=1 // pred_check
      _
    $region11: #{tpu_custom_call.1} parent=1 // pred_check_branch
      %21 = sbr.rel (0) target = $region13
    $region12: #{tpu_custom_call.1} parent=1 // pred_region
      _
    $region13: #{tpu_custom_call.1} parent=1 // pred_fallthru
      _
    // Predicated region
    $region14: #{tpu_custom_call.1} parent=1 // pred_check
      _
    $region15: #{tpu_custom_call.1} parent=1 // pred_check_branch
      %23 = sbr.rel (0) target = $region17
    $region16: #{tpu_custom_call.1} parent=1 // pred_region
      _
    $region17: #{tpu_custom_call.1} parent=1 // pred_fallthru
      _
    // Predicated region
    $region18: #{tpu_custom_call.1} parent=1 // pred_check
      _
    $region19: #{tpu_custom_call.1} parent=1 // pred_check_branch
      %25 = sbr.rel (0) target = $region21
    $region20: #{tpu_custom_call.1} parent=1 // pred_region
      _
    $region21: #{tpu_custom_call.1} parent=1 // pred_fallthru
      _
    // Predicated region
    $region22: #{tpu_custom_call.1} parent=1 // pred_check
      _
    $region23: #{tpu_custom_call.1} parent=1 // pred_check_branch
      %27 = sbr.rel (0) target = $region25
    $region24: #{tpu_custom_call.1} parent=1 // pred_region
      %s29 = ssub.s32 1024, 1024
      %30 = vsyncadd [#allocation3], %s29
      %s31 = sshll.u32 [#allocation2], 4
      %s32 = int_to_ptr.vmem [resolvable:$true] %s31
      %37 = dma.hbm_to_vmem [thread:$0]  %s5, 1024, %s32, [#allocation3], 64, 64, 4
    $region25: #{tpu_custom_call.1} parent=1 // pred_fallthru
      _
    // Predicated region
    $region26: #{tpu_custom_call.1} parent=1 // pred_check
      _
    $region27: #{tpu_custom_call.1} parent=1 // pred_check_branch
      %39 = sbr.rel (0) target = $region29
    $region28: #{tpu_custom_call.1} parent=1 // pred_region
      _
    $region29: #{tpu_custom_call.1} parent=1 // pred_fallthru
      _
    // Predicated region
    $region30: #{tpu_custom_call.1} parent=1 // pred_check
      _
    $region31: #{tpu_custom_call.1} parent=1 // pred_check_branch
      %41 = sbr.rel (0) target = $region33
    $region32: #{tpu_custom_call.1} parent=1 // pred_region
      _
    $region33: #{tpu_custom_call.1} parent=1 // pred_fallthru
      _
    // Predicated region
    $region34: #{tpu_custom_call.1} parent=1 // pred_check
      _
    $region35: #{tpu_custom_call.1} parent=1 // pred_check_branch
      %43 = sbr.rel (0) target = $region37
    $region36: #{tpu_custom_call.1} parent=1 // pred_region
      _
    $region37: #{tpu_custom_call.1} parent=1 // pred_fallthru
      _
    // Predicated region
    $region38: #{tpu_custom_call.1} parent=1 // pred_check
      _
    $region39: #{tpu_custom_call.1} parent=1 // pred_check_branch
      %45 = sbr.rel (0) target = $region41
    $region40: #{tpu_custom_call.1} parent=1 // pred_region
      %46 = dma.done [#allocation3], 1024
    $region41: #{tpu_custom_call.1} parent=1 // pred_fallthru
      _
    %v48 = vld [vmem:[%s0] sm:$0xff]
    %v49 = vld [vmem:[%s0 + $0x8] sm:$0xff]
    %v50 = vld [vmem:[%s0 + $0x10] sm:$0xff]
    %v51 = vld [vmem:[%s0 + $0x18] sm:$0xff]
    %v52 = vld [vmem:[%s0 + $0x20] sm:$0xff]
    %v53 = vld [vmem:[%s0 + $0x28] sm:$0xff]
    %v54 = vld [vmem:[%s0 + $0x30] sm:$0xff]
    %v55 = vld [vmem:[%s0 + $0x38] sm:$0xff]
    %v56 = vpack.c.bf16 %v49, %v48
    %v57 = vpack.c.bf16 %v51, %v50
    %v58 = vpack.c.bf16 %v53, %v52
    %v59 = vpack.c.bf16 %v55, %v54
    %v60 = vld [vmem:[%s1] sm:$0x7]
    %v61 = vld [vmem:[%s2] sm:$0x1]
    %v63 = vlaneseq
    %v64 = vshrl.u32 %v63, 7
    %v65 = vsub.s32 0, %v64
    %v66 = vrot.slane %v61, %v65
    %vm68 = vcmask 48128
    %v70 = vsel %vm68, %v56, 0
    %v73 = vsel %vm68, %v57, 0
    %v76 = vsel %vm68, %v58, 0
    %v79 = vsel %vm68, %v59, 0
    %vm81 = vcmask 1042432
    %v83 = vsel %vm81, %v60, 0
    %85 = vmatprep.subr.bf16.mxu0 0
    %86 = vmatpush1.bf16.msra.mxu0 0
    %87 = vmatprep.subr.bf16.mxu0 0
    %88 = vmatpush1.bf16.msra.mxu0 0
    %89 = vmatprep.subr.bf16.mxu0 0
    %90 = vmatpush1.bf16.msra.mxu0 0
    %91 = vmatprep.subr.bf16.mxu0 0
    %92 = vmatpush1.bf16.msra.mxu0 0
    %93 = vmatprep.subr.bf16.mxu0 0
    %94 = vmatpush1.bf16.msra.mxu0 0
    %95 = vmatprep.subr.bf16.mxu0 0
    %96 = vmatpush1.bf16.msra.mxu0 0
    %97 = vmatprep.subr.bf16.mxu0 0
    %98 = vmatpush1.bf16.msra.mxu0 0
    %99 = vmatprep.subr.bf16.mxu0 0
    %100 = vmatpush1.bf16.msra.mxu0 %v83
    %101 = vmatprep.subr.bf16.mxu0 0
    %102 = vmatpush2.bf16.msra.mxu0 0
    %103 = vmatprep.subr.bf16.mxu0 0
    %104 = vmatpush2.bf16.msra.mxu0 0
    %105 = vmatprep.subr.bf16.mxu0 0
    %106 = vmatpush2.bf16.msra.mxu0 0
    %107 = vmatprep.subr.bf16.mxu0 0
    %108 = vmatpush2.bf16.msra.mxu0 0
    %109 = vmatprep.subr.bf16.mxu0 0
    %110 = vmatpush2.bf16.msra.mxu0 0
    %111 = vmatprep.subr.bf16.mxu0 0
    %112 = vmatpush2.bf16.msra.mxu0 0
    %113 = vmatprep.subr.bf16.mxu0 0
    %114 = vmatpush2.bf16.msra.mxu0 0
    %115 = vmatprep.subr.bf16.mxu0 0
    %116 = vmatpush2.bf16.msra.mxu0 0
    %117 = vmatprep.mubr.bf16.mxu0 0
    %118 = vmatmul.mubr.bf16.gmra.mxu0 %v70
    %v119 = vpop.f32.mrf.mxu0
    %v120 = vadd.f32 %v66, %v119
    %v121 = vpop.f32.mrf.mxu0
    %v122 = vpop.f32.mrf.mxu0
    %v123 = vadd.f32 %v66, %v122
    %v124 = vpop.f32.mrf.mxu0
    %125 = vmatprep.mubr.bf16.mxu0 0
    %126 = vmatmul.mubr.bf16.gmra.mxu0 %v73
    %v127 = vpop.f32.mrf.mxu0
    %v128 = vadd.f32 %v66, %v127
    %v129 = vpop.f32.mrf.mxu0
    %v130 = vpop.f32.mrf.mxu0
    %v131 = vadd.f32 %v66, %v130
    %v132 = vpop.f32.mrf.mxu0
    %133 = vmatprep.mubr.bf16.mxu0 0
    %134 = vmatmul.mubr.bf16.gmra.mxu0 %v76
    %v135 = vpop.f32.mrf.mxu0
    %v136 = vadd.f32 %v66, %v135
    %v137 = vpop.f32.mrf.mxu0
    %v138 = vpop.f32.mrf.mxu0
    %v139 = vadd.f32 %v66, %v138
    %v140 = vpop.f32.mrf.mxu0
    %141 = vmatprep.mubr.bf16.mxu0 0
    %142 = vmatmul.mubr.bf16.gmra.mxu0 %v79
    %v143 = vpop.f32.mrf.mxu0
    %v144 = vadd.f32 %v66, %v143
    %v145 = vpop.f32.mrf.mxu0
    %v146 = vpop.f32.mrf.mxu0
    %v147 = vadd.f32 %v66, %v146
    %v148 = vpop.f32.mrf.mxu0
    %149 = vdwg.mxu0
    %v150 = vmax.f32 %v120, 0.0
    %v151 = vmax.f32 %v123, 0.0
    %v152 = vmax.f32 %v128, 0.0
    %v153 = vmax.f32 %v131, 0.0
    %v154 = vmax.f32 %v136, 0.0
    %v155 = vmax.f32 %v139, 0.0
    %v156 = vmax.f32 %v144, 0.0
    %v157 = vmax.f32 %v147, 0.0
    %v158 = vpack.c.bf16 %v151, %v150
    %v159 = vpack.c.bf16 %v153, %v152
    %v160 = vpack.c.bf16 %v155, %v154
    %v161 = vpack.c.bf16 %v157, %v156
    %v162 = vld [vmem:[%s3] sm:$0xf]
    %v163 = vld [vmem:[%s3 + $0x4] sm:$0xf]
    %v164 = vld [vmem:[%s3 + $0x8] sm:$0xf]
    %v165 = vld [vmem:[%s3 + $0xc] sm:$0xf]
    %v166 = vld [vmem:[%s3 + $0x10] sm:$0xf]
    %v167 = vld [vmem:[%s3 + $0x14] sm:$0xf]
    %v168 = vld [vmem:[%s3 + $0x18] sm:$0xf]
    %v169 = vld [vmem:[%s3 + $0x1c] sm:$0xf]
    %v170 = vld [vmem:[%s3 + $0x20] sm:$0xf]
    %v171 = vld [vmem:[%s3 + $0x24] sm:$0xf]
    %v172 = vld [vmem:[%s3 + $0x28] sm:$0xf]
    %v173 = vld [vmem:[%s3 + $0x2c] sm:$0xf]
    %v174 = vld [vmem:[%s3 + $0x30] sm:$0xf]
    %v175 = vld [vmem:[%s3 + $0x34] sm:$0xf]
    %v176 = vld [vmem:[%s3 + $0x38] sm:$0xf]
    %v177 = vld [vmem:[%s3 + $0x3c] sm:$0xf]
    %v178 = vld [vmem:[%s4] sm:$0x1]
    %v180 = vlaneseq
    %v181 = vshrl.u32 %v180, 7
    %v182 = vsub.s32 0, %v181
    %v183 = vrot.slane %v178, %v182
    %v201 = vunpack.c.l.b16 %v162
    %v202 = vunpack.c.l.b16 %v163
    %v203 = vunpack.c.l.b16 %v164
    %v204 = vunpack.c.l.b16 %v165
    %v205 = vunpack.c.l.b16 %v166
    %v206 = vunpack.c.l.b16 %v167
    %v207 = vunpack.c.l.b16 %v168
    %v208 = vunpack.c.l.b16 %v169
    %v209 = vunpack.c.l.b16 %v170
    %v210 = vunpack.c.l.b16 %v171
    %v211 = vunpack.c.l.b16 %v172
    %v212 = vunpack.c.l.b16 %v173
    %v213 = vunpack.c.l.b16 %v174
    %v214 = vunpack.c.l.b16 %v175
    %v215 = vunpack.c.l.b16 %v176
    %v216 = vunpack.c.l.b16 %v177
    %v217 = vpack.c.b16 %v202, %v201
    %v218 = vpack.c.b16 %v204, %v203
    %v219 = vpack.c.b16 %v206, %v205
    %v220 = vpack.c.b16 %v208, %v207
    %v221 = vpack.c.b16 %v210, %v209
    %v222 = vpack.c.b16 %v212, %v211
    %v223 = vpack.c.b16 %v214, %v213
    %v224 = vpack.c.b16 %v216, %v215
    %233 = vmatprep.subr.bf16.mxu0 0
    %234 = vmatpush1.bf16.msra.mxu0 %v224
    %235 = vmatprep.subr.bf16.mxu0 0
    %236 = vmatpush1.bf16.msra.mxu0 %v223
    %237 = vmatprep.subr.bf16.mxu0 0
    %238 = vmatpush1.bf16.msra.mxu0 %v222
    %239 = vmatprep.subr.bf16.mxu0 0
    %240 = vmatpush1.bf16.msra.mxu0 %v221
    %241 = vmatprep.subr.bf16.mxu0 0
    %242 = vmatpush1.bf16.msra.mxu0 %v220
    %243 = vmatprep.subr.bf16.mxu0 0
    %244 = vmatpush1.bf16.msra.mxu0 %v219
    %245 = vmatprep.subr.bf16.mxu0 0
    %246 = vmatpush1.bf16.msra.mxu0 %v218
    %247 = vmatprep.subr.bf16.mxu0 0
    %248 = vmatpush1.bf16.msra.mxu0 %v217
    %249 = vmatprep.subr.bf16.mxu0 0
    %250 = vmatpush2.bf16.msra.mxu0 0
    %251 = vmatprep.subr.bf16.mxu0 0
    %252 = vmatpush2.bf16.msra.mxu0 0
    %253 = vmatprep.subr.bf16.mxu0 0
    %254 = vmatpush2.bf16.msra.mxu0 0
    %255 = vmatprep.subr.bf16.mxu0 0
    %256 = vmatpush2.bf16.msra.mxu0 0
    %257 = vmatprep.subr.bf16.mxu0 0
    %258 = vmatpush2.bf16.msra.mxu0 0
    %259 = vmatprep.subr.bf16.mxu0 0
    %260 = vmatpush2.bf16.msra.mxu0 0
    %261 = vmatprep.subr.bf16.mxu0 0
    %262 = vmatpush2.bf16.msra.mxu0 0
    %263 = vmatprep.subr.bf16.mxu0 0
    %264 = vmatpush2.bf16.msra.mxu0 0
    %265 = vmatprep.mubr.bf16.mxu0 0
    %266 = vmatmul.mubr.bf16.gmra.mxu0 %v158
    %v267 = vpop.f32.mrf.mxu0
    %v268 = vadd.f32 %v183, %v267
    %v269 = vpop.f32.mrf.mxu0
    %v270 = vpop.f32.mrf.mxu0
    %v271 = vadd.f32 %v183, %v270
    %v272 = vpop.f32.mrf.mxu0
    %273 = vmatprep.mubr.bf16.mxu0 0
    %274 = vmatmul.mubr.bf16.gmra.mxu0 %v159
    %v275 = vpop.f32.mrf.mxu0
    %v276 = vadd.f32 %v183, %v275
    %v277 = vpop.f32.mrf.mxu0
    %v278 = vpop.f32.mrf.mxu0
    %v279 = vadd.f32 %v183, %v278
    %v280 = vpop.f32.mrf.mxu0
    %281 = vmatprep.mubr.bf16.mxu0 0
    %282 = vmatmul.mubr.bf16.gmra.mxu0 %v160
    %v283 = vpop.f32.mrf.mxu0
    %v284 = vadd.f32 %v183, %v283
    %v285 = vpop.f32.mrf.mxu0
    %v286 = vpop.f32.mrf.mxu0
    %v287 = vadd.f32 %v183, %v286
    %v288 = vpop.f32.mrf.mxu0
    %289 = vmatprep.mubr.bf16.mxu0 0
    %290 = vmatmul.mubr.bf16.gmra.mxu0 %v161
    %v291 = vpop.f32.mrf.mxu0
    %v292 = vadd.f32 %v183, %v291
    %v293 = vpop.f32.mrf.mxu0
    %v294 = vpop.f32.mrf.mxu0
    %v295 = vadd.f32 %v183, %v294
    %v296 = vpop.f32.mrf.mxu0
    %297 = vdwg.mxu0
    %v298 = vmax.f32 %v268, 0.0
    %v299 = vmax.f32 %v271, 0.0
    %v300 = vmax.f32 %v276, 0.0
    %v301 = vmax.f32 %v279, 0.0
    %v302 = vmax.f32 %v284, 0.0
    %v303 = vmax.f32 %v287, 0.0
    %v304 = vmax.f32 %v292, 0.0
    %v305 = vmax.f32 %v295, 0.0
    %v306 = vpack.c.bf16 %v299, %v298
    %v307 = vpack.c.bf16 %v301, %v300
    %v308 = vpack.c.bf16 %v303, %v302
    %v309 = vpack.c.bf16 %v305, %v304
    %v310 = vld [vmem:[#allocation2] sm:$0xf]
    %v311 = vld [vmem:[#allocation2 + $0x4] sm:$0xf]
    %v312 = vld [vmem:[#allocation2 + $0x8] sm:$0xf]
    %v313 = vld [vmem:[#allocation2 + $0xc] sm:$0xf]
    %v314 = vld [vmem:[#allocation2 + $0x10] sm:$0xf]
    %v315 = vld [vmem:[#allocation2 + $0x14] sm:$0xf]
    %v316 = vld [vmem:[#allocation2 + $0x18] sm:$0xf]
    %v317 = vld [vmem:[#allocation2 + $0x1c] sm:$0xf]
    %v318 = vld [vmem:[#allocation2 + $0x20] sm:$0xf]
    %v319 = vld [vmem:[#allocation2 + $0x24] sm:$0xf]
    %v320 = vld [vmem:[#allocation2 + $0x28] sm:$0xf]
    %v321 = vld [vmem:[#allocation2 + $0x2c] sm:$0xf]
    %v322 = vld [vmem:[#allocation2 + $0x30] sm:$0xf]
    %v323 = vld [vmem:[#allocation2 + $0x34] sm:$0xf]
    %v324 = vld [vmem:[#allocation2 + $0x38] sm:$0xf]
    %v325 = vld [vmem:[#allocation2 + $0x3c] sm:$0xf]
    %v326 = vld [vmem:[%s6] sm:$0x1]
    %v328 = vlaneseq
    %v329 = vshrl.u32 %v328, 7
    %v330 = vsub.s32 0, %v329
    %v331 = vrot.slane %v326, %v330
    %v349 = vunpack.c.l.b16 %v310
    %v350 = vunpack.c.l.b16 %v311
    %v351 = vunpack.c.l.b16 %v312
    %v352 = vunpack.c.l.b16 %v313
    %v353 = vunpack.c.l.b16 %v314
    %v354 = vunpack.c.l.b16 %v315
    %v355 = vunpack.c.l.b16 %v316
    %v356 = vunpack.c.l.b16 %v317
    %v357 = vunpack.c.l.b16 %v318
    %v358 = vunpack.c.l.b16 %v319
    %v359 = vunpack.c.l.b16 %v320
    %v360 = vunpack.c.l.b16 %v321
    %v361 = vunpack.c.l.b16 %v322
    %v362 = vunpack.c.l.b16 %v323
    %v363 = vunpack.c.l.b16 %v324
    %v364 = vunpack.c.l.b16 %v325
    %v365 = vpack.c.b16 %v350, %v349
    %v366 = vpack.c.b16 %v352, %v351
    %v367 = vpack.c.b16 %v354, %v353
    %v368 = vpack.c.b16 %v356, %v355
    %v369 = vpack.c.b16 %v358, %v357
    %v370 = vpack.c.b16 %v360, %v359
    %v371 = vpack.c.b16 %v362, %v361
    %v372 = vpack.c.b16 %v364, %v363
    %381 = vmatprep.subr.bf16.mxu0 0
    %382 = vmatpush1.bf16.msra.mxu0 %v372
    %383 = vmatprep.subr.bf16.mxu0 0
    %384 = vmatpush1.bf16.msra.mxu0 %v371
    %385 = vmatprep.subr.bf16.mxu0 0
    %386 = vmatpush1.bf16.msra.mxu0 %v370
    %387 = vmatprep.subr.bf16.mxu0 0
    %388 = vmatpush1.bf16.msra.mxu0 %v369
    %389 = vmatprep.subr.bf16.mxu0 0
    %390 = vmatpush1.bf16.msra.mxu0 %v368
    %391 = vmatprep.subr.bf16.mxu0 0
    %392 = vmatpush1.bf16.msra.mxu0 %v367
    %393 = vmatprep.subr.bf16.mxu0 0
    %394 = vmatpush1.bf16.msra.mxu0 %v366
    %395 = vmatprep.subr.bf16.mxu0 0
    %396 = vmatpush1.bf16.msra.mxu0 %v365
    %397 = vmatprep.subr.bf16.mxu0 0
    %398 = vmatpush2.bf16.msra.mxu0 0
    %399 = vmatprep.subr.bf16.mxu0 0
    %400 = vmatpush2.bf16.msra.mxu0 0
    %401 = vmatprep.subr.bf16.mxu0 0
    %402 = vmatpush2.bf16.msra.mxu0 0
    %403 = vmatprep.subr.bf16.mxu0 0
    %404 = vmatpush2.bf16.msra.mxu0 0
    %405 = vmatprep.subr.bf16.mxu0 0
    %406 = vmatpush2.bf16.msra.mxu0 0
    %407 = vmatprep.subr.bf16.mxu0 0
    %408 = vmatpush2.bf16.msra.mxu0 0
    %409 = vmatprep.subr.bf16.mxu0 0
    %410 = vmatpush2.bf16.msra.mxu0 0
    %411 = vmatprep.subr.bf16.mxu0 0
    %412 = vmatpush2.bf16.msra.mxu0 0
    %413 = vmatprep.mubr.bf16.mxu0 0
    %414 = vmatmul.mubr.bf16.gmra.mxu0 %v306
    %v415 = vpop.f32.mrf.mxu0
    %v416 = vadd.f32 %v331, %v415
    %v417 = vpop.f32.mrf.mxu0
    %v418 = vpop.f32.mrf.mxu0
    %v419 = vadd.f32 %v331, %v418
    %v420 = vpop.f32.mrf.mxu0
    %421 = vmatprep.mubr.bf16.mxu0 0
    %422 = vmatmul.mubr.bf16.gmra.mxu0 %v307
    %v423 = vpop.f32.mrf.mxu0
    %v424 = vadd.f32 %v331, %v423
    %v425 = vpop.f32.mrf.mxu0
    %v426 = vpop.f32.mrf.mxu0
    %v427 = vadd.f32 %v331, %v426
    %v428 = vpop.f32.mrf.mxu0
    %429 = vmatprep.mubr.bf16.mxu0 0
    %430 = vmatmul.mubr.bf16.gmra.mxu0 %v308
    %v431 = vpop.f32.mrf.mxu0
    %v432 = vadd.f32 %v331, %v431
    %v433 = vpop.f32.mrf.mxu0
    %v434 = vpop.f32.mrf.mxu0
    %v435 = vadd.f32 %v331, %v434
    %v436 = vpop.f32.mrf.mxu0
    %437 = vmatprep.mubr.bf16.mxu0 0
    %438 = vmatmul.mubr.bf16.gmra.mxu0 %v309
    %v439 = vpop.f32.mrf.mxu0
    %v440 = vadd.f32 %v331, %v439
    %v441 = vpop.f32.mrf.mxu0
    %v442 = vpop.f32.mrf.mxu0
    %v443 = vadd.f32 %v331, %v442
    %v444 = vpop.f32.mrf.mxu0
    %445 = vdwg.mxu0
    %446 = vadd.xlane.f32.xlu0 %v416
    %v447 = vpop.xlane.xlu0 %446
    %448 = vadd.xlane.f32.xlu0 %v419
    %v449 = vpop.xlane.xlu0 %448
    %450 = vadd.xlane.f32.xlu0 %v424
    %v451 = vpop.xlane.xlu0 %450
    %452 = vadd.xlane.f32.xlu0 %v427
    %v453 = vpop.xlane.xlu0 %452
    %454 = vadd.xlane.f32.xlu0 %v432
    %v455 = vpop.xlane.xlu0 %454
    %456 = vadd.xlane.f32.xlu0 %v435
    %v457 = vpop.xlane.xlu0 %456
    %458 = vadd.xlane.f32.xlu0 %v440
    %v459 = vpop.xlane.xlu0 %458
    %460 = vadd.xlane.f32.xlu0 %v443
    %v461 = vpop.xlane.xlu0 %460
    %v462 = vrcp.pop 128.0
    %v463 = vmul.f32 %v447, %v462
    %v464 = vmul.f32 %v449, %v462
    %v465 = vmul.f32 %v451, %v462
    %v466 = vmul.f32 %v453, %v462
    %v467 = vmul.f32 %v455, %v462
    %v468 = vmul.f32 %v457, %v462
    %v469 = vmul.f32 %v459, %v462
    %v470 = vmul.f32 %v461, %v462
    %v471 = vsub.f32 %v416, %v463
    %v472 = vsub.f32 %v419, %v464
    %v473 = vsub.f32 %v424, %v465
    %v474 = vsub.f32 %v427, %v466
    %v475 = vsub.f32 %v432, %v467
    %v476 = vsub.f32 %v435, %v468
    %v477 = vsub.f32 %v440, %v469
    %v478 = vsub.f32 %v443, %v470
    %v479 = vmul.f32 %v471, %v471
    %v480 = vmul.f32 %v472, %v472
    %v481 = vmul.f32 %v473, %v473
    %v482 = vmul.f32 %v474, %v474
    %v483 = vmul.f32 %v475, %v475
    %v484 = vmul.f32 %v476, %v476
    %v485 = vmul.f32 %v477, %v477
    %v486 = vmul.f32 %v478, %v478
    %487 = vadd.xlane.f32.xlu0 %v479
    %v488 = vpop.xlane.xlu0 %487
    %489 = vadd.xlane.f32.xlu0 %v480
    %v490 = vpop.xlane.xlu0 %489
    %491 = vadd.xlane.f32.xlu0 %v481
    %v492 = vpop.xlane.xlu0 %491
    %493 = vadd.xlane.f32.xlu0 %v482
    %v494 = vpop.xlane.xlu0 %493
    %495 = vadd.xlane.f32.xlu0 %v483
    %v496 = vpop.xlane.xlu0 %495
    %497 = vadd.xlane.f32.xlu0 %v484
    %v498 = vpop.xlane.xlu0 %497
    %499 = vadd.xlane.f32.xlu0 %v485
    %v500 = vpop.xlane.xlu0 %499
    %501 = vadd.xlane.f32.xlu0 %v486
    %v502 = vpop.xlane.xlu0 %501
    %v503 = vmul.f32 %v488, %v462
    %v504 = vmul.f32 %v490, %v462
    %v505 = vmul.f32 %v492, %v462
    %v506 = vmul.f32 %v494, %v462
    %v507 = vmul.f32 %v496, %v462
    %v508 = vmul.f32 %v498, %v462
    %v509 = vmul.f32 %v500, %v462
    %v510 = vmul.f32 %v502, %v462
    %v511 = vadd.f32 %v503, 1e-05
    %v512 = vadd.f32 %v504, 1e-05
    %v513 = vadd.f32 %v505, 1e-05
    %v514 = vadd.f32 %v506, 1e-05
    %v515 = vadd.f32 %v507, 1e-05
    %v516 = vadd.f32 %v508, 1e-05
    %v517 = vadd.f32 %v509, 1e-05
    %v518 = vadd.f32 %v510, 1e-05
    %v519 = vrsqrt.pop %v511
    %v520 = vrsqrt.pop %v512
    %v521 = vrsqrt.pop %v513
    %v522 = vrsqrt.pop %v514
    %v523 = vrsqrt.pop %v515
    %v524 = vrsqrt.pop %v516
    %v525 = vrsqrt.pop %v517
    %v526 = vrsqrt.pop %v518
    %v527 = vmul.f32 %v471, %v519
    %v528 = vmul.f32 %v472, %v520
    %v529 = vmul.f32 %v473, %v521
    %v530 = vmul.f32 %v474, %v522
    %v531 = vmul.f32 %v475, %v523
    %v532 = vmul.f32 %v476, %v524
    %v533 = vmul.f32 %v477, %v525
    %v534 = vmul.f32 %v478, %v526
    %v535 = vld [vmem:[%s7] sm:$0x1]
    %v537 = vlaneseq
    %v538 = vshrl.u32 %v537, 7
    %v539 = vsub.s32 0, %v538
    %v540 = vrot.slane %v535, %v539
    %v542 = vmul.f32 %v527, %v540
    %v543 = vmul.f32 %v528, %v540
    %v544 = vmul.f32 %v529, %v540
    %v545 = vmul.f32 %v530, %v540
    %v546 = vmul.f32 %v531, %v540
    %v547 = vmul.f32 %v532, %v540
    %v548 = vmul.f32 %v533, %v540
    %v549 = vmul.f32 %v534, %v540
    %v550 = vld [vmem:[%s8] sm:$0x1]
    %v552 = vlaneseq
    %v553 = vshrl.u32 %v552, 7
    %v554 = vsub.s32 0, %v553
    %v555 = vrot.slane %v550, %v554
    %v557 = vadd.f32 %v542, %v555
    %v558 = vadd.f32 %v543, %v555
    %v559 = vadd.f32 %v544, %v555
    %v560 = vadd.f32 %v545, %v555
    %v561 = vadd.f32 %v546, %v555
    %v562 = vadd.f32 %v547, %v555
    %v563 = vadd.f32 %v548, %v555
    %v564 = vadd.f32 %v549, %v555
    %565 = vst [vmem:[#allocation5] sm:$0xff] %v557
    %566 = vst [vmem:[#allocation5 + $0x8] sm:$0xff] %v558
    %567 = vst [vmem:[#allocation5 + $0x10] sm:$0xff] %v559
    %568 = vst [vmem:[#allocation5 + $0x18] sm:$0xff] %v560
    %569 = vst [vmem:[#allocation5 + $0x20] sm:$0xff] %v561
    %570 = vst [vmem:[#allocation5 + $0x28] sm:$0xff] %v562
    %571 = vst [vmem:[#allocation5 + $0x30] sm:$0xff] %v563
    %572 = vst [vmem:[#allocation5 + $0x38] sm:$0xff] %v564
    // Predicated region
    $region42: #{tpu_custom_call.1} parent=1 // pred_check
      _
    $region43: #{tpu_custom_call.1} parent=1 // pred_check_branch
      %574 = sbr.rel (0) target = $region45
    $region44: #{tpu_custom_call.1} parent=1 // pred_region
      %s576 = ssub.s32 1024, 1024
      %577 = vsyncadd [#allocation4], %s576
      %s578 = sshll.u32 [#allocation5], 4
      %s579 = int_to_ptr.vmem [resolvable:$true] %s578
      %584 = dma.vmem_to_hbm [thread:$0]  %s579, 1024, %s9, [#allocation4], 128, 128, 8
    $region45: #{tpu_custom_call.1} parent=1 // pred_fallthru
      _
    // Predicated region
    $region46: #{tpu_custom_call.1} parent=1 // pred_check
      _
    $region47: #{tpu_custom_call.1} parent=1 // pred_check_branch
      %586 = sbr.rel (0) target = $region49
    $region48: #{tpu_custom_call.1} parent=1 // pred_region
      %587 = dma.done [#allocation4], 1024
    $region49: #{tpu_custom_call.1} parent=1 // pred_fallthru
      _
    %588 = vsyncpa [#allocation3], 1
    %589 = vsyncpa [#allocation4], 1

</llo_original>
